<compile_context>
chip_gen: v7x
topology: tpu7x:2x2x1
jax: 0.10.0
libtpu: 0.0.40
codegen_flags: <defaults>
</compile_context>

<pallas_src>
import functools
import math

import jax
import jax.numpy as jnp
from jax import lax
from jax.experimental import pallas as pl
from jax.experimental.pallas import tpu as pltpu


_NEG_BIG = -1e30  # finite "minus infinity": exp() underflows to 0, no NaN paths


def _round_up(a, m):
    return ((a + m - 1) // m) * m


def _cdiv(a, b):
    return (a + b - 1) // b


def mlm_kernel(x_ref, w_ref, b_ref, o_ref, m_sc, l_sc, *, tv, v_total):
    """Fused logits + online logsumexp + in-place normalization.

    Grid: (i = row tile, parallel; j = vocab tile, arbitrary/innermost).
    o_ref is the full (tm, V) row-slab, resident across the vocab sweep.
    m_sc / l_sc are lane-wise (tm, 128) running max / running sum-exp.
    """
    j = pl.program_id(1)
    gv = pl.num_programs(1)

    @pl.when(j == 0)
    def _():
        m_sc[...] = jnp.full_like(m_sc, _NEG_BIG)
        l_sc[...] = jnp.zeros_like(l_sc)

    # MXU matmul on bf16 operands, f32 accumulation; W kept in [V, H] layout
    # (contract on H) so no transposed/padded weight copy exists in HBM.
    logits = lax.dot_general(
        x_ref[...], w_ref[...],
        dimension_numbers=(((1,), (1,)), ((), ())),
        preferred_element_type=jnp.float32)            # (tm, tv) f32
    logits = logits + b_ref[...]                       # bias add in f32

    col0 = pl.multiple_of(j * tv, 128)
    if v_total % tv != 0:
        # Mask out-of-vocab tail columns (the partial last W/bias block holds
        # unspecified values) with a finite, very negative number.
        col_ids = col0 + lax.broadcasted_iota(jnp.int32, logits.shape, 1)
        logits = jnp.where(col_ids < v_total, logits, _NEG_BIG)

    # Online logsumexp with deferred cross-lane reduction: element-wise (VALU)
    # max / add per 128-lane group; the XLU cross-lane reduce runs only once,
    # at the last vocab tile.
    m_prev = m_sc[...]
    m_new = m_prev
    for c in range(tv // 128):
        m_new = jnp.maximum(m_new, logits[:, c * 128:(c + 1) * 128])
    l_new = l_sc[...] * jnp.exp(m_prev - m_new)
    for c in range(tv // 128):
        l_new = l_new + jnp.exp(logits[:, c * 128:(c + 1) * 128] - m_new)
    m_sc[...] = m_new
    l_sc[...] = l_new

    # Stash raw logits into the resident output row-slab (lane-aligned dynamic
    # store; the last vocab tile may be narrower than tv).
    tail = v_total - (gv - 1) * tv
    if tail == tv:
        o_ref[:, pl.ds(col0, tv)] = logits
    else:
        @pl.when(j < gv - 1)
        def _():
            o_ref[:, pl.ds(col0, tv)] = logits

        @pl.when(j == gv - 1)
        def _():
            o_ref[:, pl.ds(col0, tail)] = logits[:, :tail]

    # Last vocab tile: fold lane-wise accumulators into per-row logsumexp and
    # normalize the whole slab in place -> final log-probs written to HBM once.
    @pl.when(j == gv - 1)
    def _():
        m_vec = m_sc[...]
        l_vec = l_sc[...]
        m_row = jnp.max(m_vec, axis=-1, keepdims=True)                 # (tm, 1)
        l_row = jnp.sum(l_vec * jnp.exp(m_vec - m_row), axis=-1,
                        keepdims=True)
        lse = m_row + jnp.log(l_row)
        # Subtract in tile-wide static chunks to bound temporaries.
        n_full = v_total // tv
        for c in range(n_full):
            o_ref[:, c * tv:(c + 1) * tv] = o_ref[:, c * tv:(c + 1) * tv] - lse
        if v_total - n_full * tv:
            o_ref[:, n_full * tv:] = o_ref[:, n_full * tv:] - lse


def _vmem_capacity_bytes():
    try:
        info = pltpu.get_tpu_info()
        return int(getattr(info, "vmem_capacity_bytes", 64 * 1024 * 1024))
    except Exception:
        return 64 * 1024 * 1024  # v7x per-TensorCore VMEM: smallest current gen


def _workset_bytes(tm, tv, H, V):
    hp = _round_up(H, 128)
    vp = _round_up(V, 128)
    slab = 2 * tm * vp * 4            # resident output row-slab (double-buffered)
    xb = 2 * tm * hp * 2              # x tile (bf16, double-buffered)
    wb = 2 * tv * hp * 2              # W tile (bf16, double-buffered)
    bias = 2 * _round_up(tv, 128) * 4
    scr = 2 * tm * 128 * 4            # lane-wise m / l accumulators
    return slab + xb + wb + bias + scr + (2 << 20)  # + margin for temporaries


def masked_language_model(x, w, b, *, tm_target=512, tv_max=512):
    """x: [B, S, H]; w: [V, H] (PyTorch nn.Linear layout); b: [V].
    Returns log-probs [B, S, V] float32."""
    B, S, H = x.shape
    V = w.shape[0]
    M = B * S

    vmem_phys = _vmem_capacity_bytes()
    budget = int(vmem_phys * 0.6)

    # Lane-dense vocab tile; large MXU-friendly row tile, shrunk to fit VMEM.
    tv = min(tv_max, _round_up(V, 128))
    tm = min(tm_target, _round_up(M, 8))
    while _workset_bytes(tm, tv, H, V) > budget and tm > 8:
        tm = max(8, _round_up(tm // 2, 8))
    while _workset_bytes(tm, tv, H, V) > budget and tv > 128:
        tv = max(128, _round_up(tv // 2, 128))
    # v7x has 2 TensorCores: keep >= 2 tiles on the "parallel" row axis when
    # there is enough work to split (no-op for tiny M).
    if M >= 256 and M <= tm:
        tm = _round_up((M + 1) // 2, 8)

    gm, gv = _cdiv(M, tm), _cdiv(V, tv)

    # Casts only (no transpose / pad copies).  Pass bf16 weights to skip the
    # cast entirely in the hot path (e.g. keep a cached bf16 weight copy).
    x2d = x.reshape(M, H)
    x2d = x2d if x2d.dtype == jnp.bfloat16 else x2d.astype(jnp.bfloat16)
    w_bf = w if w.dtype == jnp.bfloat16 else w.astype(jnp.bfloat16)
    b2d = b.astype(jnp.float32).reshape(1, V)

    cost = pl.CostEstimate(
        flops=2 * gm * tm * H * gv * tv,
        transcendentals=gm * tm * gv * tv,
        bytes_accessed=M * H * 2 + gm * V * H * 2 + V * 4 + M * V * 4,
    )

    kernel = functools.partial(mlm_kernel, tv=tv, v_total=V)
    out = pl.pallas_call(
        kernel,
        out_shape=jax.ShapeDtypeStruct((M, V), jnp.float32),
        grid=(gm, gv),
        in_specs=[
            pl.BlockSpec((tm, H), lambda i, j: (i, 0)),   # x row tile (DMA skipped across j)
            pl.BlockSpec((tv, H), lambda i, j: (j, 0)),   # W slab, PyTorch [V, H] layout
            pl.BlockSpec((1, tv), lambda i, j: (0, j)),   # bias slab
        ],
        out_specs=pl.BlockSpec((tm, V), lambda i, j: (i, 0)),   # resident row-slab
        scratch_shapes=[pltpu.VMEM((tm, 128), jnp.float32),     # lane-wise running max
                        pltpu.VMEM((tm, 128), jnp.float32)],    # lane-wise running sum-exp
        compiler_params=pltpu.CompilerParams(
            dimension_semantics=("parallel", "arbitrary"),
            vmem_limit_bytes=min(int(vmem_phys * 0.8), 128 * 1024 * 1024),
        ),
        cost_estimate=cost,
    )(x2d, w_bf, b2d)

    return out.reshape(B, S, V)


def _reference(x, w, b):
    return jax.nn.log_softmax(x @ w.T + b, axis=-1)


def _run_case(key, B, S, H, V, name):
    kx, kw, kb = jax.random.split(key, 3)
    # Deterministic params matching nn.Linear init: U(-1/sqrt(H), 1/sqrt(H)).
    bound = 1.0 / math.sqrt(H)
    w = jax.random.uniform(kw, (V, H), jnp.float32, -bound, bound)  # PyTorch [V, H]
    b = jax.random.uniform(kb, (V,), jnp.float32, -bound, bound)
    x = jax.random.normal(kx, (B, S, H), jnp.float32)

    out = jax.block_until_ready(masked_language_model(x, w, b))
    assert out.shape == (B, S, V), (name, out.shape)

    # Tight check vs a reference on the same bf16-rounded operands (f32 accum).
    xb = x.astype(jnp.bfloat16).astype(jnp.float32)
    wb = w.astype(jnp.bfloat16).astype(jnp.float32)
    ref_bf16 = _reference(xb, wb, b)
    assert jnp.allclose(out, ref_bf16, atol=2e-3, rtol=2e-3), \
        f"{name}: mismatch vs bf16-input reference"

    # Loose check vs the exact f32 module semantics.
    ref_f32 = _reference(x, w, b)
    assert jnp.allclose(out, ref_f32, atol=5e-2, rtol=0.0), \
        f"{name}: mismatch vs f32 reference"


if __name__ == "__main__":
    key = jax.random.PRNGKey(0)
    k1, k2 = jax.random.split(key)
    # Small shapes implied by the module: [batch, seq, hidden] -> [batch, seq, vocab].
    _run_case(k1, B=2, S=8, H=32, V=128, name="aligned")
    # Also exercise partial row blocks, multiple vocab tiles and the masked tail.
    _run_case(k2, B=2, S=5, H=48, V=640, name="ragged")
    print("KERNEL_OK")
</pallas_src>

<mosaic_0001>
module attributes {stable_mosaic.version = 11 : i64} {
  func.func @mlm_kernel(%arg0: i32, %arg1: i32, %arg2: memref<16x32xbf16, #tpu.memory_space<vmem>>, %arg3: memref<128x32xbf16, #tpu.memory_space<vmem>>, %arg4: memref<1x128xf32, #tpu.memory_space<vmem>>, %arg5: memref<16x128xf32, #tpu.memory_space<vmem>>, %arg6: memref<16x128xf32, #tpu.memory_space<vmem>>, %arg7: memref<16x128xf32, #tpu.memory_space<vmem>>) attributes {dimension_semantics = [#tpu.dimension_semantics<parallel>, #tpu.dimension_semantics<arbitrary>], iteration_bounds = array<i64: 1, 1>, scalar_prefetch = 0 : i64, scratch_operands = 2 : i64, tpu.core_type = #tpu.core_type<tc>, window_params = [{transform_indices = @transform_0, window_bounds = array<i64: 16, 32>}, {transform_indices = @transform_1, window_bounds = array<i64: 128, 32>}, {transform_indices = @transform_2, window_bounds = array<i64: 1, 128>}, {transform_indices = @transform_3, window_bounds = array<i64: 16, 128>}]} {
    %c0_i32 = arith.constant 0 : i32
    %0 = arith.cmpi eq, %arg1, %c0_i32 : i32
    %1 = arith.extui %0 : i1 to i32
    %c0_i32_0 = arith.constant 0 : i32
    %2 = arith.cmpi ne, %1, %c0_i32_0 : i32
    scf.if %2 {
      %cst_17 = arith.constant -1.000000e+30 : f32
      %27 = vector.broadcast %cst_17 : f32 to vector<16x128xf32>
      %c0_18 = arith.constant 0 : index
      %c0_19 = arith.constant 0 : index
      %28 = vector.load %arg6[%c0_18, %c0_19] : memref<16x128xf32, #tpu.memory_space<vmem>>, vector<16x128xf32>
      tpu.vector_store %arg6[%c0_18, %c0_19], %27 {strides = array<i32>} : memref<16x128xf32, #tpu.memory_space<vmem>>, vector<16x128xf32>,
      %cst_20 = arith.constant 0.000000e+00 : f32
      %29 = vector.broadcast %cst_20 : f32 to vector<16x128xf32>
      %c0_21 = arith.constant 0 : index
      %c0_22 = arith.constant 0 : index
      %30 = vector.load %arg7[%c0_21, %c0_22] : memref<16x128xf32, #tpu.memory_space<vmem>>, vector<16x128xf32>
      tpu.vector_store %arg7[%c0_21, %c0_22], %29 {strides = array<i32>} : memref<16x128xf32, #tpu.memory_space<vmem>>, vector<16x128xf32>,
    } else {
    }
    %c0 = arith.constant 0 : index
    %c0_1 = arith.constant 0 : index
    %3 = vector.load %arg2[%c0, %c0_1] : memref<16x32xbf16, #tpu.memory_space<vmem>>, vector<16x32xbf16>
    %c0_2 = arith.constant 0 : index
    %c0_3 = arith.constant 0 : index
    %4 = vector.load %arg3[%c0_2, %c0_3] : memref<128x32xbf16, #tpu.memory_space<vmem>>, vector<128x32xbf16>
    %cst = arith.constant dense<0.000000e+00> : vector<16x128xf32>
    %5 = tpu.matmul %3, %4, %cst {dimension_numbers = #tpu.dot_dimension_numbers<[1], [1], [0], [0], [0, 0, 1, 0], [], []>} : vector<16x32xbf16>, vector<128x32xbf16>, vector<16x128xf32> -> vector<16x128xf32>
    %c0_4 = arith.constant 0 : index
    %c0_5 = arith.constant 0 : index
    %6 = vector.load %arg4[%c0_4, %c0_5] : memref<1x128xf32, #tpu.memory_space<vmem>>, vector<1x128xf32>
    %7 = vector.broadcast %6 : vector<1x128xf32> to vector<16x128xf32>
    %8 = arith.addf %5, %7 : vector<16x128xf32>
    %c128_i32 = arith.constant 128 : i32
    %9 = arith.muli %arg1, %c128_i32 : i32
    %10 = tpu.assume_multiple %9, 128 : i32
    %c0_6 = arith.constant 0 : index
    %c0_7 = arith.constant 0 : index
    %11 = vector.load %arg6[%c0_6, %c0_7] : memref<16x128xf32, #tpu.memory_space<vmem>>, vector<16x128xf32>
    %12 = arith.maximumf %11, %8 : vector<16x128xf32>
    %c0_8 = arith.constant 0 : index
    %c0_9 = arith.constant 0 : index
    %13 = vector.load %arg7[%c0_8, %c0_9] : memref<16x128xf32, #tpu.memory_space<vmem>>, vector<16x128xf32>
    %14 = arith.subf %11, %12 : vector<16x128xf32>
    %15 = math.exp %14 : vector<16x128xf32>
    %16 = arith.mulf %13, %15 : vector<16x128xf32>
    %17 = arith.subf %8, %12 : vector<16x128xf32>
    %18 = math.exp %17 : vector<16x128xf32>
    %19 = arith.addf %16, %18 : vector<16x128xf32>
    %c0_10 = arith.constant 0 : index
    %c0_11 = arith.constant 0 : index
    %20 = vector.load %arg6[%c0_10, %c0_11] : memref<16x128xf32, #tpu.memory_space<vmem>>, vector<16x128xf32>
    tpu.vector_store %arg6[%c0_10, %c0_11], %12 {strides = array<i32>} : memref<16x128xf32, #tpu.memory_space<vmem>>, vector<16x128xf32>,
    %c0_12 = arith.constant 0 : index
    %c0_13 = arith.constant 0 : index
    %21 = vector.load %arg7[%c0_12, %c0_13] : memref<16x128xf32, #tpu.memory_space<vmem>>, vector<16x128xf32>
    tpu.vector_store %arg7[%c0_12, %c0_13], %19 {strides = array<i32>} : memref<16x128xf32, #tpu.memory_space<vmem>>, vector<16x128xf32>,
    %c0_14 = arith.constant 0 : index
    %22 = arith.index_cast %10 : i32 to index
    %23 = vector.load %arg5[%c0_14, %22] : memref<16x128xf32, #tpu.memory_space<vmem>>, vector<16x128xf32>
    tpu.vector_store %arg5[%c0_14, %22], %8 {strides = array<i32>} : memref<16x128xf32, #tpu.memory_space<vmem>>, vector<16x128xf32>,
    %c0_i32_15 = arith.constant 0 : i32
    %24 = arith.cmpi eq, %arg1, %c0_i32_15 : i32
    %25 = arith.extui %24 : i1 to i32
    %c0_i32_16 = arith.constant 0 : i32
    %26 = arith.cmpi ne, %25, %c0_i32_16 : i32
    scf.if %26 {
      %c0_17 = arith.constant 0 : index
      %c0_18 = arith.constant 0 : index
      %27 = vector.load %arg6[%c0_17, %c0_18] : memref<16x128xf32, #tpu.memory_space<vmem>>, vector<16x128xf32>
      %c0_19 = arith.constant 0 : index
      %c0_20 = arith.constant 0 : index
      %28 = vector.load %arg7[%c0_19, %c0_20] : memref<16x128xf32, #tpu.memory_space<vmem>>, vector<16x128xf32>
      %cst_21 = arith.constant dense<0xFF800000> : vector<16xf32>
      %29 = vector.multi_reduction <maximumf>, %27, %cst_21 [1] : vector<16x128xf32> to vector<16xf32>
      %30 = vector.shape_cast %29 : vector<16xf32> to vector<16x1xf32>
      %31 = vector.broadcast %30 : vector<16x1xf32> to vector<16x128xf32>
      %32 = arith.subf %27, %31 : vector<16x128xf32>
      %33 = math.exp %32 : vector<16x128xf32>
      %34 = arith.mulf %28, %33 : vector<16x128xf32>
      %cst_22 = arith.constant dense<0.000000e+00> : vector<16xf32>
      %35 = vector.multi_reduction <add>, %34, %cst_22 [1] : vector<16x128xf32> to vector<16xf32>
      %36 = vector.shape_cast %35 : vector<16xf32> to vector<16x1xf32>
      %37 = math.log %36 : vector<16x1xf32>
      %38 = arith.addf %30, %37 : vector<16x1xf32>
      %c0_23 = arith.constant 0 : index
      %c0_24 = arith.constant 0 : index
      %39 = vector.load %arg5[%c0_23, %c0_24] : memref<16x128xf32, #tpu.memory_space<vmem>>, vector<16x128xf32>
      %40 = vector.broadcast %38 : vector<16x1xf32> to vector<16x128xf32>
      %41 = arith.subf %39, %40 : vector<16x128xf32>
      %c0_25 = arith.constant 0 : index
      %c0_26 = arith.constant 0 : index
      %42 = vector.load %arg5[%c0_25, %c0_26] : memref<16x128xf32, #tpu.memory_space<vmem>>, vector<16x128xf32>
      tpu.vector_store %arg5[%c0_25, %c0_26], %41 {strides = array<i32>} : memref<16x128xf32, #tpu.memory_space<vmem>>, vector<16x128xf32>,
    } else {
    }
    return
  }
  func.func @transform_0(%arg0: i32, %arg1: i32) -> (i32, i32) {
    %c0_i32 = arith.constant 0 : i32
    %c0_i32_0 = arith.constant 0 : i32
    return %arg0, %c0_i32 : i32, i32
  }
  func.func @transform_1(%arg0: i32, %arg1: i32) -> (i32, i32) {
    %c0_i32 = arith.constant 0 : i32
    %c0_i32_0 = arith.constant 0 : i32
    return %arg1, %c0_i32 : i32, i32
  }
  func.func @transform_2(%arg0: i32, %arg1: i32) -> (i32, i32) {
    %c0_i32 = arith.constant 0 : i32
    %c0_i32_0 = arith.constant 0 : i32
    return %c0_i32, %arg1 : i32, i32
  }
  func.func @transform_3(%arg0: i32, %arg1: i32) -> (i32, i32) {
    %c0_i32 = arith.constant 0 : i32
    %c0_i32_0 = arith.constant 0 : i32
    return %arg0, %c0_i32 : i32, i32
  }
}

</mosaic_0001>

<llo_original>
// kernel: tpu_custom_call.1
$region0: #{tpu_custom_call.1}
  #allocation0 [shape = 'u32[]', space=smem, size = 0x4, offset = 0x4, fixed_abs, tag = 'smem constant byte address 0x4 - core index']
  #allocation1 [shape = 'u32[144,128]{1,0:T(1,128)}', space=vmem, size = 0x12000, scoped, tag = 'internal scratch']
  #allocation2 [shape = 'f32[16,128]{1,0:T(8,128)}', space=vmem, size = 0x2000, scoped, tag = 'scratch operand']
  #allocation3 [shape = 'f32[16,128]{1,0:T(8,128)}', space=vmem, size = 0x2000, scoped, tag = 'scratch operand']
  %s0 = inlined_call_operand.vmem [shape: bf16[16,32], index: 0, kind: input, shape index: {}]
  %s1 = inlined_call_operand.vmem [shape: bf16[128,32], index: 1, kind: input, shape index: {}]
  %s2 = inlined_call_operand.vmem [shape: f32[1,128], index: 2, kind: input, shape index: {}]
  %s3 = inlined_call_operand.hbm [shape: f32[16,128], index: 3, kind: output, shape index: {}]
  %s4 = sld [smem:[#allocation0]]
  $region30: #{tpu_custom_call.1} parent=0
    _
  %s6 = ssub.s32 1, %s4
  %s7 = scalar_select 0, %s6, %s4
  $region1: #{tpu_custom_call.1} parent=0
    #allocation4 [shape = 'u8[8192]{0}', space=vmem, size = 0x2000, scoped, tag = 'output window, operand 0, single buffered']
    #allocation5 [shape = 's32[1]{0}', space=sflag, size = 0x4, scoped, tag = 'scoped memory for tpu_custom_call.1']
    %8 = vsyncpa [#allocation5], 0
    // Predicated region
    $region2: #{tpu_custom_call.1} parent=1 // pred_check
      _
    $region3: #{tpu_custom_call.1} parent=1 // pred_check_branch
      %10 = sbr.rel (0) target = $region5
    $region4: #{tpu_custom_call.1} parent=1 // pred_region
      _
    $region5: #{tpu_custom_call.1} parent=1 // pred_fallthru
      _
    // Predicated region
    $region6: #{tpu_custom_call.1} parent=1 // pred_check
      _
    $region7: #{tpu_custom_call.1} parent=1 // pred_check_branch
      %12 = sbr.rel (0) target = $region9
    $region8: #{tpu_custom_call.1} parent=1 // pred_region
      _
    $region9: #{tpu_custom_call.1} parent=1 // pred_fallthru
      _
    // Predicated region
    $region10: #{tpu_custom_call.1} parent=1 // pred_check
      _
    $region11: #{tpu_custom_call.1} parent=1 // pred_check_branch
      %14 = sbr.rel (0) target = $region13
    $region12: #{tpu_custom_call.1} parent=1 // pred_region
      _
    $region13: #{tpu_custom_call.1} parent=1 // pred_fallthru
      _
    %p16 = scmp.eq.s32.totalorder 0, 0
    // Predicated region
    $region14: #{tpu_custom_call.1} parent=1 // pred_check
      %p17 = pneg %p16
    $region15: #{tpu_custom_call.1} parent=1 // pred_check_branch
      %19 = sbr.rel (%p17) target = $region17
    $region16: #{tpu_custom_call.1} parent=1 // pred_region
      %20 = vst [vmem:[#allocation2] sm:$0xff] -1e+30
      %21 = vst [vmem:[#allocation2 + $0x8] sm:$0xff] -1e+30
      %22 = vst [vmem:[#allocation3] sm:$0xff] 0.0
      %23 = vst [vmem:[#allocation3 + $0x8] sm:$0xff] 0.0
    $region17: #{tpu_custom_call.1} parent=1 // pred_fallthru
      _
    %v24 = vld [vmem:[%s0] sm:$0xf]
    %v25 = vld [vmem:[%s0 + $0x4] sm:$0xf]
    %v26 = vld [vmem:[%s1] sm:$0xf]
    %v27 = vld [vmem:[%s1 + $0x4] sm:$0xf]
    %v28 = vld [vmem:[%s1 + $0x8] sm:$0xf]
    %v29 = vld [vmem:[%s1 + $0xc] sm:$0xf]
    %v30 = vld [vmem:[%s1 + $0x10] sm:$0xf]
    %v31 = vld [vmem:[%s1 + $0x14] sm:$0xf]
    %v32 = vld [vmem:[%s1 + $0x18] sm:$0xf]
    %v33 = vld [vmem:[%s1 + $0x1c] sm:$0xf]
    %v34 = vld [vmem:[%s1 + $0x20] sm:$0xf]
    %v35 = vld [vmem:[%s1 + $0x24] sm:$0xf]
    %v36 = vld [vmem:[%s1 + $0x28] sm:$0xf]
    %v37 = vld [vmem:[%s1 + $0x2c] sm:$0xf]
    %v38 = vld [vmem:[%s1 + $0x30] sm:$0xf]
    %v39 = vld [vmem:[%s1 + $0x34] sm:$0xf]
    %v40 = vld [vmem:[%s1 + $0x38] sm:$0xf]
    %v41 = vld [vmem:[%s1 + $0x3c] sm:$0xf]
    %v42 = vld [vmem:[%s2] sm:$0x1]
    %v44 = vlaneseq
    %v45 = vshrl.u32 %v44, 7
    %v46 = vsub.s32 0, %v45
    %v47 = vrot.slane %v42, %v46
    %v51 = vunpack.c.l.b16 %v24
    %v52 = vunpack.c.l.b16 %v25
    %v53 = vpack.c.b16 %v52, %v51
    %v70 = vunpack.c.l.b16 %v26
    %v71 = vunpack.c.l.b16 %v27
    %v72 = vunpack.c.l.b16 %v28
    %v73 = vunpack.c.l.b16 %v29
    %v74 = vunpack.c.l.b16 %v30
    %v75 = vunpack.c.l.b16 %v31
    %v76 = vunpack.c.l.b16 %v32
    %v77 = vunpack.c.l.b16 %v33
    %v78 = vunpack.c.l.b16 %v34
    %v79 = vunpack.c.l.b16 %v35
    %v80 = vunpack.c.l.b16 %v36
    %v81 = vunpack.c.l.b16 %v37
    %v82 = vunpack.c.l.b16 %v38
    %v83 = vunpack.c.l.b16 %v39
    %v84 = vunpack.c.l.b16 %v40
    %v85 = vunpack.c.l.b16 %v41
    %v86 = vpack.c.b16 %v71, %v70
    %v87 = vpack.c.b16 %v73, %v72
    %v88 = vpack.c.b16 %v75, %v74
    %v89 = vpack.c.b16 %v77, %v76
    %v90 = vpack.c.b16 %v79, %v78
    %v91 = vpack.c.b16 %v81, %v80
    %v92 = vpack.c.b16 %v83, %v82
    %v93 = vpack.c.b16 %v85, %v84
    %vm94 = vcmask 261120
    %v96 = vsel %vm94, %v53, 0
    %v99 = vsel %vm94, %v86, 0
    %v102 = vsel %vm94, %v87, 0
    %v105 = vsel %vm94, %v88, 0
    %v108 = vsel %vm94, %v89, 0
    %v111 = vsel %vm94, %v90, 0
    %v114 = vsel %vm94, %v91, 0
    %v117 = vsel %vm94, %v92, 0
    %v120 = vsel %vm94, %v93, 0
    %122 = vmatprep.subr.bf16.mxu0 0
    %123 = vmatpush1.bf16.xpose.msra.mxu0 %v99
    %124 = vmatprep.subr.bf16.mxu0 0
    %125 = vmatpush1.bf16.xpose.msra.mxu0 %v102
    %126 = vmatprep.subr.bf16.mxu0 0
    %127 = vmatpush1.bf16.xpose.msra.mxu0 %v105
    %128 = vmatprep.subr.bf16.mxu0 0
    %129 = vmatpush1.bf16.xpose.msra.mxu0 %v108
    %130 = vmatprep.subr.bf16.mxu0 0
    %131 = vmatpush1.bf16.xpose.msra.mxu0 %v111
    %132 = vmatprep.subr.bf16.mxu0 0
    %133 = vmatpush1.bf16.xpose.msra.mxu0 %v114
    %134 = vmatprep.subr.bf16.mxu0 0
    %135 = vmatpush1.bf16.xpose.msra.mxu0 %v117
    %136 = vmatprep.subr.bf16.mxu0 0
    %137 = vmatpush1.bf16.xpose.msra.mxu0 %v120
    %138 = vmatprep.subr.bf16.mxu0 0
    %139 = vmatpush1.bf16.xpose.msra.mxu0 0
    %140 = vmatprep.subr.bf16.mxu0 0
    %141 = vmatpush1.bf16.xpose.msra.mxu0 0
    %142 = vmatprep.subr.bf16.mxu0 0
    %143 = vmatpush1.bf16.xpose.msra.mxu0 0
    %144 = vmatprep.subr.bf16.mxu0 0
    %145 = vmatpush1.bf16.xpose.msra.mxu0 0
    %146 = vmatprep.subr.bf16.mxu0 0
    %147 = vmatpush1.bf16.xpose.msra.mxu0 0
    %148 = vmatprep.subr.bf16.mxu0 0
    %149 = vmatpush1.bf16.xpose.msra.mxu0 0
    %150 = vmatprep.subr.bf16.mxu0 0
    %151 = vmatpush1.bf16.xpose.msra.mxu0 0
    %152 = vmatprep.subr.bf16.mxu0 0
    %153 = vmatpush1.bf16.xpose.msra.mxu0 0
    %154 = vmatprep.mubr.bf16.mxu0 0
    %155 = vmatmul.mubr.bf16.gmra.mrb[0].mxu0 %v96
    %v156 = vpop.f32.mrb[0].mxu0
    %v157 = vadd.f32 %v47, %v156
    %v158 = vpop.f32.mrb[0].mxu0
    %v159 = vpop.f32.mrb[0].mxu0
    %v160 = vadd.f32 %v47, %v159
    %v161 = vpop.f32.mrb[0].mxu0
    %162 = vdwg.mxu0
    %s163 = smul.u32 0, 128
    %v164 = vld [vmem:[#allocation2] sm:$0xff]
    %v165 = vld [vmem:[#allocation2 + $0x8] sm:$0xff]
    %v166 = vmax.f32 %v164, %v157
    %v167 = vmax.f32 %v165, %v160
    %v168 = vld [vmem:[#allocation3] sm:$0xff]
    %v169 = vld [vmem:[#allocation3 + $0x8] sm:$0xff]
    %v170 = vsub.f32 %v164, %v166
    %v171 = vsub.f32 %v165, %v167
    %v172 = vmul.f32 %v170, 1.442695
    %v173 = vpow.pop %v172
    %v174 = vmul.f32 %v171, 1.442695
    %v175 = vpow.pop %v174
    %v176 = vmul.f32 %v168, %v173
    %v177 = vmul.f32 %v169, %v175
    %v178 = vsub.f32 %v157, %v166
    %v179 = vsub.f32 %v160, %v167
    %v180 = vmul.f32 %v178, 1.442695
    %v181 = vpow.pop %v180
    %v182 = vmul.f32 %v179, 1.442695
    %v183 = vpow.pop %v182
    %v184 = vadd.f32 %v176, %v181
    %v185 = vadd.f32 %v177, %v183
    %186 = vst [vmem:[#allocation2] sm:$0xff] %v166
    %187 = vst [vmem:[#allocation2 + $0x8] sm:$0xff] %v167
    %188 = vst [vmem:[#allocation3] sm:$0xff] %v184
    %189 = vst [vmem:[#allocation3 + $0x8] sm:$0xff] %v185
    %s190 = sshra.s32 %s163, 7
    %s191 = sand.u32 %s163, 127
    %s192 = scalar_lea.vmem [#allocation4], %s190
    %193 = vst [vmem:[%s192] sm:$0xff] %v157
    %194 = vst [vmem:[%s192 + $0x8] sm:$0xff] %v160
    // Predicated region
    $region18: #{tpu_custom_call.1} parent=1 // pred_check
      %p195 = pneg %p16
    $region19: #{tpu_custom_call.1} parent=1 // pred_check_branch
      %197 = sbr.rel (%p195) target = $region21
    $region20: #{tpu_custom_call.1} parent=1 // pred_region
      %v198 = vld [vmem:[#allocation2] sm:$0xff]
      %v199 = vld [vmem:[#allocation2 + $0x8] sm:$0xff]
      %v200 = vld [vmem:[#allocation3] sm:$0xff]
      %v201 = vld [vmem:[#allocation3 + $0x8] sm:$0xff]
      %202 = vmax.xlane.f32.xlu0 %v198
      %v203 = vpop.xlane.xlu0 %202
      %204 = vmax.xlane.f32.xlu0 %v199
      %v205 = vpop.xlane.xlu0 %204
      %v206 = vsub.f32 %v198, %v203
      %v207 = vsub.f32 %v199, %v205
      %v208 = vmul.f32 %v206, 1.442695
      %v209 = vpow.pop %v208
      %v210 = vmul.f32 %v207, 1.442695
      %v211 = vpow.pop %v210
      %v212 = vmul.f32 %v200, %v209
      %v213 = vmul.f32 %v201, %v211
      %214 = vadd.xlane.f32.xlu0 %v212
      %v215 = vpop.xlane.xlu0 %214
      %216 = vadd.xlane.f32.xlu0 %v213
      %v217 = vpop.xlane.xlu0 %216
      %v218 = vlog2.pop %v215
      %v219 = vmul.f32 %v218, 0.6931472
      %v220 = vlog2.pop %v217
      %v221 = vmul.f32 %v220, 0.6931472
      %v222 = vadd.f32 %v203, %v219
      %v223 = vadd.f32 %v205, %v221
      %v224 = vld [vmem:[#allocation4] sm:$0xff]
      %v225 = vld [vmem:[#allocation4 + $0x8] sm:$0xff]
      %v226 = vsub.f32 %v224, %v222
      %v227 = vsub.f32 %v225, %v223
      %228 = vst [vmem:[#allocation4] sm:$0xff] %v226
      %229 = vst [vmem:[#allocation4 + $0x8] sm:$0xff] %v227
    $region21: #{tpu_custom_call.1} parent=1 // pred_fallthru
      _
    // Predicated region
    $region22: #{tpu_custom_call.1} parent=1 // pred_check
      _
    $region23: #{tpu_custom_call.1} parent=1 // pred_check_branch
      %231 = sbr.rel (0) target = $region25
    $region24: #{tpu_custom_call.1} parent=1 // pred_region
      %s233 = ssub.s32 256, 256
      %234 = vsyncadd [#allocation5], %s233
      %s235 = sshll.u32 [#allocation4], 4
      %s236 = int_to_ptr.vmem [resolvable:$true] %s235
      %241 = dma.vmem_to_hbm [thread:$0]  %s236, 256, %s3, [#allocation5], 128, 128, 8
    $region25: #{tpu_custom_call.1} parent=1 // pred_fallthru
      _
    // Predicated region
    $region26: #{tpu_custom_call.1} parent=1 // pred_check
      _
    $region27: #{tpu_custom_call.1} parent=1 // pred_check_branch
      %243 = sbr.rel (0) target = $region29
    $region28: #{tpu_custom_call.1} parent=1 // pred_region
      %244 = dma.done [#allocation5], 256
    $region29: #{tpu_custom_call.1} parent=1 // pred_fallthru
      _
    %245 = vsyncpa [#allocation5], 1

</llo_original>
